<compile_context>
chip_gen: v7x
topology: tpu7x:2x2x1
jax: 0.10.0
libtpu: 0.0.40
codegen_flags: <defaults>
</compile_context>

<pallas_src>
import functools

import jax
import jax.numpy as jnp
from jax.experimental import pallas as pl
from jax.experimental.pallas import tpu as pltpu


def _round_up(x: int, m: int) -> int:
    return ((x + m - 1) // m) * m


# ----------------------------------------------------------------------------
# Pallas kernel: per (image, token-tile) patch-embed matmul + GELU + partial
# column-sum pooling; classifier head + logits store on the last token tile.
# ----------------------------------------------------------------------------
def _logits_kernel(tokens_per_image, mask_tail,
                   patches_ref, w_emb_ref, b_emb_ref, w_head_ref, b_head_ref,
                   out_ref, acc_ref):
    # patches_ref: (1, TT, Dp_pad) bf16     w_emb_ref:  (Dp_pad, D_pad)  bf16
    # b_emb_ref:   (1, D_pad)      f32      w_head_ref: (D_pad, NC_pad)  bf16
    # b_head_ref:  (1, NC_pad)     f32      out_ref:    (1, 8, NC_pad)   f32
    # acc_ref:     (8, D_pad)      f32 scratch (partial pooled sums per image)
    k = pl.program_id(1)

    @pl.when(k == 0)
    def _init():
        acc_ref[...] = jnp.zeros_like(acc_ref)

    # Patch embedding: lane-dense bf16 MXU matmul with f32 accumulation.
    tokens = jnp.dot(patches_ref[0], w_emb_ref[...],
                     preferred_element_type=jnp.float32)          # (TT, D_pad)
    tokens = tokens + b_emb_ref[...]                               # f32 bias
    tokens = jax.nn.gelu(tokens, approximate=True)                 # EUP tanh, f32

    tt, dpad = tokens.shape
    # Zero-pad token rows carry GELU(bias) != 0; mask only when padding exists
    # (static) — cheap VPU compare/select, no int division, no selector matmul.
    if mask_tail:
        row = jax.lax.broadcasted_iota(jnp.int32, (tt, 1), 0)
        valid = (k * tt + row) < tokens_per_image
        tokens = jnp.where(valid, tokens, 0.0)

    # Pool as a pure-VALU partial column-sum: group rows 8-at-a-time so the
    # accumulator update is an unmasked full-vreg (8, D_pad) RMW.  No second
    # MXU pass, no XLU cross-sublane reduce in the hot loop.
    acc_ref[...] += tokens.reshape(tt // 8, 8, dpad).sum(axis=0)

    # Classifier head + logits store: once, on the last token tile.
    @pl.when(k == pl.num_programs(1) - 1)
    def _finalize():
        pooled = (jnp.sum(acc_ref[...], axis=0, keepdims=True)
                  * (1.0 / tokens_per_image))                      # (1, D_pad) f32
        logits = jnp.dot(pooled.astype(jnp.bfloat16), w_head_ref[...],
                         preferred_element_type=jnp.float32)       # (1, NC_pad)
        logits = logits + b_head_ref[...]
        # Lane-dense unmasked slab store; wrapper keeps row 0.
        out_ref[...] = jnp.broadcast_to(logits, out_ref.shape).astype(out_ref.dtype)


def huggingface_to_tensor_forward(x, params, *, patch=4, token_tile=512):
    """Equivalent of HuggingfaceToTensorModelWrapper(model)(x): returns logits."""
    w_emb, b_emb, w_head, b_head = params
    B, C, H, W = x.shape
    P = patch
    nH, nW = H // P, W // P
    N = nH * nW                       # tokens per image
    Dp = C * P * P
    D = w_emb.shape[1]
    NC = w_head.shape[1]

    # Lane/sublane-friendly padded sizes.
    Dp_pad = _round_up(Dp, 128)
    D_pad = _round_up(D, 128)
    NC_pad = _round_up(NC, 128)

    # Image-aligned token tiles, rounded to the bf16 sublane packing (16).
    # Production callers should keep >=256-aligned tiles (MXU M cadence); the
    # 512 default already is.
    TT = min(_round_up(token_tile, 16), _round_up(N, 16))
    N_pad = _round_up(N, TT)
    n_tok_tiles = N_pad // TT

    # Glue (layout only): NCHW -> (B, N, Dp) token-major patches; zero-pad to
    # lane-dense shapes; bf16 for MXU operands (f32 accumulation in-kernel).
    patches = (x.reshape(B, C, nH, P, nW, P)
                 .transpose(0, 2, 4, 1, 3, 5)
                 .reshape(B, N, Dp))
    patches = jnp.pad(patches, ((0, 0), (0, N_pad - N), (0, Dp_pad - Dp)))
    patches = patches.astype(jnp.bfloat16)

    w_emb_p = jnp.pad(w_emb, ((0, Dp_pad - Dp), (0, D_pad - D))).astype(jnp.bfloat16)
    b_emb_p = jnp.pad(b_emb.reshape(1, D), ((0, 0), (0, D_pad - D))).astype(jnp.float32)
    w_head_p = jnp.pad(w_head, ((0, D_pad - D), (0, NC_pad - NC))).astype(jnp.bfloat16)
    b_head_p = jnp.pad(b_head.reshape(1, NC), ((0, 0), (0, NC_pad - NC))).astype(jnp.float32)

    kernel = functools.partial(_logits_kernel, N, N_pad != N)

    cost = pl.CostEstimate(
        flops=(2 * B * N_pad * Dp_pad * D_pad       # patch embedding (MXU)
               + B * N_pad * D_pad                  # pooling partial sums (VALU)
               + 2 * B * D_pad * NC_pad),           # classifier head (MXU)
        transcendentals=B * N_pad * D_pad,          # tanh GELU
        bytes_accessed=(patches.size * 2
                        + (w_emb_p.size + w_head_p.size) * 2
                        + (b_emb_p.size + b_head_p.size) * 4
                        + B * 8 * NC_pad * 4),
    )

    # VMEM budget at default tiles is well under the scoped limit on all of
    # v5e/v6e/v7x; set vmem_limit_bytes explicitly if TT >= 1024 or D grows.
    out = pl.pallas_call(
        kernel,
        out_shape=jax.ShapeDtypeStruct((B, 8, NC_pad), jnp.float32),
        grid_spec=pltpu.PrefetchScalarGridSpec(
            num_scalar_prefetch=0,
            grid=(B, n_tok_tiles),
            in_specs=[
                pl.BlockSpec((1, TT, Dp_pad), lambda b, k: (b, k, 0)),    # token tile
                pl.BlockSpec((Dp_pad, D_pad), lambda b, k: (0, 0)),       # w_emb
                pl.BlockSpec((1, D_pad), lambda b, k: (0, 0)),            # b_emb
                pl.BlockSpec((D_pad, NC_pad), lambda b, k: (0, 0)),       # w_head
                pl.BlockSpec((1, NC_pad), lambda b, k: (0, 0)),           # b_head
            ],
            out_specs=pl.BlockSpec((1, 8, NC_pad), lambda b, k: (b, 0, 0)),
            scratch_shapes=[pltpu.VMEM((8, D_pad), jnp.float32)],
        ),
        compiler_params=pltpu.CompilerParams(
            # batch axis parallel (v7x megacore), token axis is the reduction.
            dimension_semantics=("parallel", "arbitrary")),
        cost_estimate=cost,
    )(patches, w_emb_p, b_emb_p, w_head_p, b_head_p)

    # Strip padding back to the real number of classes (== `.logits`).
    return out[:, 0, :NC]


def _reference_forward(x, params, *, patch=4):
    """Pure-JAX (f32) reference of the same synthetic model."""
    w_emb, b_emb, w_head, b_head = params
    B, C, H, W = x.shape
    P = patch
    nH, nW = H // P, W // P
    patches = (x.reshape(B, C, nH, P, nW, P)
                 .transpose(0, 2, 4, 1, 3, 5)
                 .reshape(B, nH * nW, C * P * P))
    tokens = jnp.einsum("bnp,pd->bnd", patches, w_emb) + b_emb
    tokens = jax.nn.gelu(tokens, approximate=True)
    pooled = jnp.mean(tokens, axis=1)
    return jnp.dot(pooled, w_head) + b_head


if __name__ == "__main__":
    key = jax.random.PRNGKey(0)
    k_x, k_we, k_be, k_wh, k_bh, k_x2, k_we2, k_wh2 = jax.random.split(key, 8)

    # Small shapes consistent with an image-classifier forward.
    B, C, H, W = 2, 4, 16, 16
    P = 4
    D = 32          # hidden size
    NC = 10         # num_classes
    Dp = C * P * P  # 64

    x = jax.random.normal(k_x, (B, C, H, W), dtype=jnp.float32)

    # Deterministic synthetic parameters (shapes implied by the forward pass).
    # TODO(synk): the real HF backbone (pretrained ViT/ResNet etc.) cannot be
    # loaded here; a fixed synthetic classifier stands in for `self.model`.
    params = (
        0.05 * jax.random.normal(k_we, (Dp, D), dtype=jnp.float32),   # patch embed
        0.05 * jax.random.normal(k_be, (1, D), dtype=jnp.float32),
        0.05 * jax.random.normal(k_wh, (D, NC), dtype=jnp.float32),   # classifier
        0.05 * jax.random.normal(k_bh, (1, NC), dtype=jnp.float32),
    )

    logits = huggingface_to_tensor_forward(x, params, patch=P)
    logits = jax.block_until_ready(logits)
    ref = _reference_forward(x, params, patch=P)
    assert logits.shape == (B, NC)
    # bf16 MXU operands vs. f32 reference -> slightly relaxed tolerance.
    assert jnp.allclose(logits, ref, atol=2e-2, rtol=2e-2)

    # Second config: 20x20 image -> N=25 tokens, token_tile=16 -> two token
    # tiles per image, exercising the accumulator (init / accumulate /
    # finalize) and tail-row masking paths.
    B2, C2, H2, W2 = 2, 3, 20, 20
    Dp2 = C2 * P * P
    x2 = jax.random.normal(k_x2, (B2, C2, H2, W2), dtype=jnp.float32)
    params2 = (
        0.05 * jax.random.normal(k_we2, (Dp2, D), dtype=jnp.float32),
        params[1],
        0.05 * jax.random.normal(k_wh2, (D, NC), dtype=jnp.float32),
        params[3],
    )
    logits2 = huggingface_to_tensor_forward(x2, params2, patch=P, token_tile=16)
    logits2 = jax.block_until_ready(logits2)
    ref2 = _reference_forward(x2, params2, patch=P)
    assert logits2.shape == (B2, NC)
    assert jnp.allclose(logits2, ref2, atol=2e-2, rtol=2e-2)

    print("KERNEL_OK")
</pallas_src>

<mosaic_0001>
module attributes {stable_mosaic.version = 11 : i64} {
  func.func @_logits_kernel(%arg0: i32, %arg1: i32, %arg2: memref<1x16x128xbf16, #tpu.memory_space<vmem>>, %arg3: memref<128x128xbf16, #tpu.memory_space<vmem>>, %arg4: memref<1x128xf32, #tpu.memory_space<vmem>>, %arg5: memref<128x128xbf16, #tpu.memory_space<vmem>>, %arg6: memref<1x128xf32, #tpu.memory_space<vmem>>, %arg7: memref<1x8x128xf32, #tpu.memory_space<vmem>>, %arg8: memref<8x128xf32, #tpu.memory_space<vmem>>) attributes {dimension_semantics = [#tpu.dimension_semantics<parallel>, #tpu.dimension_semantics<arbitrary>], iteration_bounds = array<i64: 2, 1>, scalar_prefetch = 0 : i64, scratch_operands = 1 : i64, tpu.core_type = #tpu.core_type<tc>, window_params = [{transform_indices = @transform_0, window_bounds = array<i64: 1, 16, 128>}, {pipeline_mode = #tpu.pipeline_mode<synchronous>, transform_indices = @transform_1, window_bounds = array<i64: 128, 128>}, {pipeline_mode = #tpu.pipeline_mode<synchronous>, transform_indices = @transform_2, window_bounds = array<i64: 1, 128>}, {pipeline_mode = #tpu.pipeline_mode<synchronous>, transform_indices = @transform_3, window_bounds = array<i64: 128, 128>}, {pipeline_mode = #tpu.pipeline_mode<synchronous>, transform_indices = @transform_4, window_bounds = array<i64: 1, 128>}, {transform_indices = @transform_5, window_bounds = array<i64: 1, 8, 128>}]} {
    %c0_i32 = arith.constant 0 : i32
    %0 = arith.cmpi eq, %arg1, %c0_i32 : i32
    %1 = arith.extui %0 : i1 to i32
    %c0_i32_0 = arith.constant 0 : i32
    %2 = arith.cmpi ne, %1, %c0_i32_0 : i32
    scf.if %2 {
      %cst_18 = arith.constant 0.000000e+00 : f32
      %31 = vector.broadcast %cst_18 : f32 to vector<8x128xf32>
      %c0_19 = arith.constant 0 : index
      %c0_20 = arith.constant 0 : index
      %32 = vector.load %arg8[%c0_19, %c0_20] : memref<8x128xf32, #tpu.memory_space<vmem>>, vector<8x128xf32>
      tpu.vector_store %arg8[%c0_19, %c0_20], %31 {strides = array<i32>} : memref<8x128xf32, #tpu.memory_space<vmem>>, vector<8x128xf32>,
    } else {
    }
    %c0 = arith.constant 0 : index
    %c0_1 = arith.constant 0 : index
    %c0_2 = arith.constant 0 : index
    %3 = vector.load %arg2[%c0, %c0_1, %c0_2] : memref<1x16x128xbf16, #tpu.memory_space<vmem>>, vector<1x16x128xbf16>
    %4 = vector.shape_cast %3 : vector<1x16x128xbf16> to vector<16x128xbf16>
    %c0_3 = arith.constant 0 : index
    %c0_4 = arith.constant 0 : index
    %5 = vector.load %arg3[%c0_3, %c0_4] : memref<128x128xbf16, #tpu.memory_space<vmem>>, vector<128x128xbf16>
    %cst = arith.constant dense<0.000000e+00> : vector<16x128xf32>
    %6 = tpu.matmul %4, %5, %cst {dimension_numbers = #tpu.dot_dimension_numbers<[1], [0], [0], [1], [0, 0, 1, 1], [], []>} : vector<16x128xbf16>, vector<128x128xbf16>, vector<16x128xf32> -> vector<16x128xf32>
    %c0_5 = arith.constant 0 : index
    %c0_6 = arith.constant 0 : index
    %7 = vector.load %arg4[%c0_5, %c0_6] : memref<1x128xf32, #tpu.memory_space<vmem>>, vector<1x128xf32>
    %8 = vector.broadcast %7 : vector<1x128xf32> to vector<16x128xf32>
    %9 = arith.addf %6, %8 : vector<16x128xf32>
    %10 = arith.mulf %9, %9 : vector<16x128xf32>
    %11 = arith.mulf %9, %10 : vector<16x128xf32>
    %cst_7 = arith.constant 4.471500e-02 : f32
    %12 = vector.broadcast %cst_7 : f32 to vector<16x128xf32>
    %13 = arith.mulf %12, %11 : vector<16x128xf32>
    %14 = arith.addf %9, %13 : vector<16x128xf32>
    %cst_8 = arith.constant 0.797884583 : f32
    %15 = vector.broadcast %cst_8 : f32 to vector<16x128xf32>
    %16 = arith.mulf %15, %14 : vector<16x128xf32>
    %17 = math.tanh %16 : vector<16x128xf32>
    %cst_9 = arith.constant 1.000000e+00 : f32
    %18 = vector.broadcast %cst_9 : f32 to vector<16x128xf32>
    %19 = arith.addf %18, %17 : vector<16x128xf32>
    %cst_10 = arith.constant 5.000000e-01 : f32
    %20 = vector.broadcast %cst_10 : f32 to vector<16x128xf32>
    %21 = arith.mulf %20, %19 : vector<16x128xf32>
    %22 = arith.mulf %9, %21 : vector<16x128xf32>
    %c0_11 = arith.constant 0 : index
    %c0_12 = arith.constant 0 : index
    %23 = vector.load %arg8[%c0_11, %c0_12] : memref<8x128xf32, #tpu.memory_space<vmem>>, vector<8x128xf32>
    %24 = vector.shape_cast %22 : vector<16x128xf32> to vector<2x8x128xf32>
    %cst_13 = arith.constant dense<0.000000e+00> : vector<8x128xf32>
    %25 = vector.multi_reduction <add>, %24, %cst_13 [0] : vector<2x8x128xf32> to vector<8x128xf32>
    %26 = arith.addf %23, %25 : vector<8x128xf32>
    %c0_14 = arith.constant 0 : index
    %c0_15 = arith.constant 0 : index
    %27 = vector.load %arg8[%c0_14, %c0_15] : memref<8x128xf32, #tpu.memory_space<vmem>>, vector<8x128xf32>
    tpu.vector_store %arg8[%c0_14, %c0_15], %26 {strides = array<i32>} : memref<8x128xf32, #tpu.memory_space<vmem>>, vector<8x128xf32>,
    %c0_i32_16 = arith.constant 0 : i32
    %28 = arith.cmpi eq, %arg1, %c0_i32_16 : i32
    %29 = arith.extui %28 : i1 to i32
    %c0_i32_17 = arith.constant 0 : i32
    %30 = arith.cmpi ne, %29, %c0_i32_17 : i32
    scf.if %30 {
      %c0_18 = arith.constant 0 : index
      %c0_19 = arith.constant 0 : index
      %31 = vector.load %arg8[%c0_18, %c0_19] : memref<8x128xf32, #tpu.memory_space<vmem>>, vector<8x128xf32>
      %cst_20 = arith.constant dense<0.000000e+00> : vector<128xf32>
      %32 = vector.multi_reduction <add>, %31, %cst_20 [0] : vector<8x128xf32> to vector<128xf32>
      %33 = vector.shape_cast %32 : vector<128xf32> to vector<1x128xf32>
      %cst_21 = arith.constant 6.250000e-02 : f32
      %34 = vector.broadcast %cst_21 : f32 to vector<1x128xf32>
      %35 = arith.mulf %33, %34 : vector<1x128xf32>
      %36 = arith.truncf %35 : vector<1x128xf32> to vector<1x128xbf16>
      %c0_22 = arith.constant 0 : index
      %c0_23 = arith.constant 0 : index
      %37 = vector.load %arg5[%c0_22, %c0_23] : memref<128x128xbf16, #tpu.memory_space<vmem>>, vector<128x128xbf16>
      %cst_24 = arith.constant dense<0.000000e+00> : vector<1x128xf32>
      %38 = tpu.matmul %36, %37, %cst_24 {dimension_numbers = #tpu.dot_dimension_numbers<[1], [0], [0], [1], [0, 0, 1, 1], [], []>} : vector<1x128xbf16>, vector<128x128xbf16>, vector<1x128xf32> -> vector<1x128xf32>
      %c0_25 = arith.constant 0 : index
      %c0_26 = arith.constant 0 : index
      %39 = vector.load %arg6[%c0_25, %c0_26] : memref<1x128xf32, #tpu.memory_space<vmem>>, vector<1x128xf32>
      %40 = arith.addf %38, %39 : vector<1x128xf32>
      %41 = vector.shape_cast %40 : vector<1x128xf32> to vector<1x1x128xf32>
      %42 = vector.broadcast %41 : vector<1x1x128xf32> to vector<1x8x128xf32>
      %c0_27 = arith.constant 0 : index
      %c0_28 = arith.constant 0 : index
      %c0_29 = arith.constant 0 : index
      %43 = vector.load %arg7[%c0_27, %c0_28, %c0_29] : memref<1x8x128xf32, #tpu.memory_space<vmem>>, vector<1x8x128xf32>
      tpu.vector_store %arg7[%c0_27, %c0_28, %c0_29], %42 {strides = array<i32>} : memref<1x8x128xf32, #tpu.memory_space<vmem>>, vector<1x8x128xf32>,
    } else {
    }
    return
  }
  func.func @transform_0(%arg0: i32, %arg1: i32) -> (i32, i32, i32) {
    %c0_i32 = arith.constant 0 : i32
    %c0_i32_0 = arith.constant 0 : i32
    return %arg0, %arg1, %c0_i32 : i32, i32, i32
  }
  func.func @transform_1(%arg0: i32, %arg1: i32) -> (i32, i32) {
    %c0_i32 = arith.constant 0 : i32
    %c0_i32_0 = arith.constant 0 : i32
    %c0_i32_1 = arith.constant 0 : i32
    return %c0_i32, %c0_i32_0 : i32, i32
  }
  func.func @transform_2(%arg0: i32, %arg1: i32) -> (i32, i32) {
    %c0_i32 = arith.constant 0 : i32
    %c0_i32_0 = arith.constant 0 : i32
    %c0_i32_1 = arith.constant 0 : i32
    return %c0_i32, %c0_i32_0 : i32, i32
  }
  func.func @transform_3(%arg0: i32, %arg1: i32) -> (i32, i32) {
    %c0_i32 = arith.constant 0 : i32
    %c0_i32_0 = arith.constant 0 : i32
    %c0_i32_1 = arith.constant 0 : i32
    return %c0_i32, %c0_i32_0 : i32, i32
  }
  func.func @transform_4(%arg0: i32, %arg1: i32) -> (i32, i32) {
    %c0_i32 = arith.constant 0 : i32
    %c0_i32_0 = arith.constant 0 : i32
    %c0_i32_1 = arith.constant 0 : i32
    return %c0_i32, %c0_i32_0 : i32, i32
  }
  func.func @transform_5(%arg0: i32, %arg1: i32) -> (i32, i32, i32) {
    %c0_i32 = arith.constant 0 : i32
    %c0_i32_0 = arith.constant 0 : i32
    %c0_i32_1 = arith.constant 0 : i32
    return %arg0, %c0_i32, %c0_i32_0 : i32, i32, i32
  }
}

</mosaic_0001>

<llo_original>
// kernel: tpu_custom_call.1
$region0: #{tpu_custom_call.1}
  #allocation0 [shape = 'u32[]', space=smem, size = 0x4, offset = 0x4, fixed_abs, tag = 'smem constant byte address 0x4 - core index']
  #allocation1 [shape = 'u32[144,128]{1,0:T(1,128)}', space=vmem, size = 0x12000, scoped, tag = 'internal scratch']
  #allocation2 [shape = 'f32[8,128]{1,0:T(8,128)}', space=vmem, size = 0x1000, scoped, tag = 'scratch operand']
  %s0 = inlined_call_operand.hbm [shape: bf16[2,16,128], index: 0, kind: input, shape index: {}]
  %s1 = inlined_call_operand.hbm [shape: bf16[128,128], index: 1, kind: input, shape index: {}]
  %s2 = inlined_call_operand.vmem [shape: f32[1,128], index: 2, kind: input, shape index: {}]
  %s3 = inlined_call_operand.hbm [shape: bf16[128,128], index: 3, kind: input, shape index: {}]
  %s4 = inlined_call_operand.vmem [shape: f32[1,128], index: 4, kind: input, shape index: {}]
  %s5 = inlined_call_operand.hbm [shape: f32[2,8,128], index: 5, kind: output, shape index: {}]
  %s6 = sld [smem:[#allocation0]]
  $region73: #{tpu_custom_call.1} parent=0
    _
  %s8 = ssub.s32 1, %s6
  %s9 = scalar_select 0, %s8, %s6
  $region1: #{tpu_custom_call.1} parent=0
    #allocation3 [shape = 'u8[8192]{0}', space=vmem, size = 0x2000, scoped, tag = 'input window, operand 0']
    #allocation4 [shape = 's32[2]{0}', space=sflag, size = 0x8, scoped, tag = 'scoped memory for tpu_custom_call.1']
    #allocation5 [shape = 's32[2]{0}', space=sflag, size = 0x8, scoped, tag = 'scoped memory for tpu_custom_call.1']
    #allocation6 [shape = 'u8[32768]{0}', space=vmem, size = 0x8000, scoped, tag = 'input window, operand 1, single buffered']
    #allocation7 [shape = 's32[1]{0}', space=sflag, size = 0x4, scoped, tag = 'scoped memory for tpu_custom_call.1']
    #allocation8 [shape = 'u8[32768]{0}', space=vmem, size = 0x8000, scoped, tag = 'input window, operand 3, single buffered']
    #allocation9 [shape = 'u8[8192]{0}', space=vmem, size = 0x2000, scoped, tag = 'output window, operand 0']
    %10 = vsyncpa [#allocation4], 0
    %s11 = scalar_lea.sflag [#allocation4], 1
    %12 = vsyncpa %s11, 0
    %13 = vsyncpa [#allocation7], 0
    %14 = vsyncpa [#allocation5], 0
    %s15 = scalar_lea.sflag [#allocation5], 1
    %16 = vsyncpa %s15, 0
    loop: start=0, step=1, limit=4
    $region2: #{tpu_custom_call.1} parent=1 // loop_pre_header
      _
    $region3: #{tpu_custom_call.1} parent=1 // loop_header
      %s18 = sphi 0, %s22
      %p19 = scmp.ge.s32.totalorder %s18, 4
      %s25 = sphi 0, %s37
      %s26 = sphi 0, %s33
      %s27 = sphi 0, %s25
      %s28 = sphi 0, %s26
      %s29 = sphi 0, %s27
      %s30 = sphi 0, %s28
      %s42 = sphi 0, %s44
      %s45 = sphi 0, %s42
      %s46 = sphi 0, %s45
      %s62 = sphi 0, %s46
      %s66 = sphi 0, %s66
      %s68 = sphi 0, %s66
      %s69 = sphi 0, %s68
      %s83 = sphi 0, %s69
      %s87 = sphi 0, %s87
      %s89 = sphi 0, %s87
      %s90 = sphi 0, %s89
      %s104 = sphi 0, %s90
      %s108 = sphi 0, %s108
      %s110 = sphi 0, %s108
      %s111 = sphi 0, %s110
      %s125 = sphi 0, %s111
      %s129 = sphi 0, %s129
      %s131 = sphi 0, %s129
      %s132 = sphi 0, %s131
      %s146 = sphi 0, %s132
      %s152 = sphi 0, %s154
      %s155 = sphi 0, %s152
      %s156 = sphi 0, %s155
      %s172 = sphi 0, %s156
    $region4: #{tpu_custom_call.1} parent=1 // loop_header_branch
      %21 = sbr.rel (%p19) target = $region8
    $region5: #{tpu_custom_call.1} parent=1 // loop_body
      %s23 = ssub.s32 %s18, 1
      %s24 = ssub.s32 %s18, 2
      %s31 = sadd.s32 1, %s26
      %p32 = scmp.ge.s32.totalorder %s31, 1
      %s33 = scalar_select %p32, 0, %s31
      %s34 = sadd.s32 1, %s25
      %s35 = scalar_select %p32, %s34, %s25
      %p36 = scmp.ge.s32.totalorder %s35, 2
      %s37 = scalar_select %p36, 0, %s35
      %s38 = ssub.s32 %s25, %s37
      %s39 = ssub.s32 %s26, %s33
      %s40 = sor.u32 %s38, %s39
      %p41 = scmp.eq.s32.totalorder %s40, 0
      %s43 = sadd.s32 %s42, 1
      %s44 = scalar_select %p41, %s42, %s43
      %p47 = pneg %p41
      %p48 = scmp.eq.s32.totalorder %s18, 1
      %p49 = por %p47, %p48
      %p50 = scmp.ne.s32.totalorder %s42, %s45
      %p51 = scmp.eq.s32.totalorder %s18, 0
      %p52 = por %p50, %p51
      %p53 = scmp.ne.s32.totalorder %s42, %s45
      %p54 = scmp.eq.s32.totalorder %s23, 1
      %p55 = por %p53, %p54
      %p56 = scmp.ne.s32.totalorder %s45, %s46
      %p57 = scmp.eq.s32.totalorder %s23, 0
      %p58 = por %p56, %p57
      %p59 = scmp.ne.s32.totalorder %s45, %s46
      %p60 = scmp.eq.s32.totalorder %s24, 1
      %p61 = por %p59, %p60
      %p63 = scmp.ne.s32.totalorder %s46, %s62
      %p64 = scmp.eq.s32.totalorder %s24, 0
      %p65 = por %p63, %p64
      %s67 = sadd.s32 %s66, 1
      %p70 = scmp.eq.s32.totalorder %s18, 1
      %p71 = scmp.ne.s32.totalorder %s66, %s68
      %p72 = scmp.eq.s32.totalorder %s18, 0
      %p73 = por %p71, %p72
      %p74 = scmp.ne.s32.totalorder %s66, %s68
      %p75 = scmp.eq.s32.totalorder %s23, 1
      %p76 = por %p74, %p75
      %p77 = scmp.ne.s32.totalorder %s68, %s69
      %p78 = scmp.eq.s32.totalorder %s23, 0
      %p79 = por %p77, %p78
      %p80 = scmp.ne.s32.totalorder %s68, %s69
      %p81 = scmp.eq.s32.totalorder %s24, 1
      %p82 = por %p80, %p81
      %p84 = scmp.ne.s32.totalorder %s69, %s83
      %p85 = scmp.eq.s32.totalorder %s24, 0
      %p86 = por %p84, %p85
      %s88 = sadd.s32 %s87, 1
      %p91 = scmp.eq.s32.totalorder %s18, 1
      %p92 = scmp.ne.s32.totalorder %s87, %s89
      %p93 = scmp.eq.s32.totalorder %s18, 0
      %p94 = por %p92, %p93
      %p95 = scmp.ne.s32.totalorder %s87, %s89
      %p96 = scmp.eq.s32.totalorder %s23, 1
      %p97 = por %p95, %p96
      %p98 = scmp.ne.s32.totalorder %s89, %s90
      %p99 = scmp.eq.s32.totalorder %s23, 0
      %p100 = por %p98, %p99
      %p101 = scmp.ne.s32.totalorder %s89, %s90
      %p102 = scmp.eq.s32.totalorder %s24, 1
      %p103 = por %p101, %p102
      %p105 = scmp.ne.s32.totalorder %s90, %s104
      %p106 = scmp.eq.s32.totalorder %s24, 0
      %p107 = por %p105, %p106
      %s109 = sadd.s32 %s108, 1
      %p112 = scmp.eq.s32.totalorder %s18, 1
      %p113 = scmp.ne.s32.totalorder %s108, %s110
      %p114 = scmp.eq.s32.totalorder %s18, 0
      %p115 = por %p113, %p114
      %p116 = scmp.ne.s32.totalorder %s108, %s110
      %p117 = scmp.eq.s32.totalorder %s23, 1
      %p118 = por %p116, %p117
      %p119 = scmp.ne.s32.totalorder %s110, %s111
      %p120 = scmp.eq.s32.totalorder %s23, 0
      %p121 = por %p119, %p120
      %p122 = scmp.ne.s32.totalorder %s110, %s111
      %p123 = scmp.eq.s32.totalorder %s24, 1
      %p124 = por %p122, %p123
      %p126 = scmp.ne.s32.totalorder %s111, %s125
      %p127 = scmp.eq.s32.totalorder %s24, 0
      %p128 = por %p126, %p127
      %s130 = sadd.s32 %s129, 1
      %p133 = scmp.eq.s32.totalorder %s18, 1
      %p134 = scmp.ne.s32.totalorder %s129, %s131
      %p135 = scmp.eq.s32.totalorder %s18, 0
      %p136 = por %p134, %p135
      %p137 = scmp.ne.s32.totalorder %s129, %s131
      %p138 = scmp.eq.s32.totalorder %s23, 1
      %p139 = por %p137, %p138
      %p140 = scmp.ne.s32.totalorder %s131, %s132
      %p141 = scmp.eq.s32.totalorder %s23, 0
      %p142 = por %p140, %p141
      %p143 = scmp.ne.s32.totalorder %s131, %s132
      %p144 = scmp.eq.s32.totalorder %s24, 1
      %p145 = por %p143, %p144
      %p147 = scmp.ne.s32.totalorder %s132, %s146
      %p148 = scmp.eq.s32.totalorder %s24, 0
      %p149 = por %p147, %p148
      %s150 = ssub.s32 %s25, %s37
      %p151 = scmp.eq.s32.totalorder %s150, 0
      %s153 = sadd.s32 %s152, 1
      %s154 = scalar_select %p151, %s152, %s153
      %p157 = pneg %p151
      %p158 = scmp.eq.s32.totalorder %s18, 1
      %p159 = por %p157, %p158
      %p160 = scmp.ne.s32.totalorder %s152, %s155
      %p161 = scmp.eq.s32.totalorder %s18, 0
      %p162 = por %p160, %p161
      %p163 = scmp.ne.s32.totalorder %s152, %s155
      %p164 = scmp.eq.s32.totalorder %s23, 1
      %p165 = por %p163, %p164
      %p166 = scmp.ne.s32.totalorder %s155, %s156
      %p167 = scmp.eq.s32.totalorder %s23, 0
      %p168 = por %p166, %p167
      %p169 = scmp.ne.s32.totalorder %s155, %s156
      %p170 = scmp.eq.s32.totalorder %s24, 1
      %p171 = por %p169, %p170
      %p173 = scmp.ne.s32.totalorder %s156, %s172
      %p174 = scmp.eq.s32.totalorder %s24, 0
      %p175 = por %p173, %p174
      %p176 = scmp.le.s32.totalorder 1, %s18
      %p177 = scmp.lt.s32.totalorder %s18, 3
      %p178 = pnand %p176, %p177
      %p179 = pneg %p178
      // Predicated region
      $region9: #{tpu_custom_call.1} parent=5 // pred_check
        _
      $region10: #{tpu_custom_call.1} parent=5 // pred_check_branch
        %181 = sbr.rel (%p178) target = $region12
      $region11: #{tpu_custom_call.1} parent=5 // pred_region
        %s182 = ssub.s32 %s18, 1
        // Predicated region
        $region13: #{tpu_custom_call.1} parent=11 // pred_check
          %p183 = pneg %p79
        $region14: #{tpu_custom_call.1} parent=11 // pred_check_branch
          %185 = sbr.rel (%p183) target = $region16
        $region15: #{tpu_custom_call.1} parent=11 // pred_region
          %s187 = ssub.s32 1024, 1024
          %188 = vsyncadd [#allocation7], %s187
          %s189 = sshll.u32 [#allocation6], 4
          %s190 = int_to_ptr.vmem [resolvable:$true] %s189
          %195 = dma.hbm_to_vmem [thread:$0]  %s1, 1024, %s190, [#allocation7], 64, 64, 4
        $region16: #{tpu_custom_call.1} parent=11 // pred_fallthru
          _
        // Predicated region
        $region17: #{tpu_custom_call.1} parent=11 // pred_check
          %p196 = pneg %p100
        $region18: #{tpu_custom_call.1} parent=11 // pred_check_branch
          %198 = sbr.rel (%p196) target = $region20
        $region19: #{tpu_custom_call.1} parent=11 // pred_region
          _
        $region20: #{tpu_custom_call.1} parent=11 // pred_fallthru
          _
        // Predicated region
        $region21: #{tpu_custom_call.1} parent=11 // pred_check
          %p199 = pneg %p121
        $region22: #{tpu_custom_call.1} parent=11 // pred_check_branch
          %201 = sbr.rel (%p199) target = $region24
        $region23: #{tpu_custom_call.1} parent=11 // pred_region
          %s203 = ssub.s32 1024, 1024
          %204 = vsyncadd [#allocation7], %s203
          %s205 = sshll.u32 [#allocation8], 4
          %s206 = int_to_ptr.vmem [resolvable:$true] %s205
          %211 = dma.hbm_to_vmem [thread:$0]  %s3, 1024, %s206, [#allocation7], 64, 64, 4
        $region24: #{tpu_custom_call.1} parent=11 // pred_fallthru
          _
        // Predicated region
        $region25: #{tpu_custom_call.1} parent=11 // pred_check
          %p212 = pneg %p142
        $region26: #{tpu_custom_call.1} parent=11 // pred_check_branch
          %214 = sbr.rel (%p212) target = $region28
        $region27: #{tpu_custom_call.1} parent=11 // pred_region
          _
        $region28: #{tpu_custom_call.1} parent=11 // pred_fallthru
          _
      $region12: #{tpu_custom_call.1} parent=5 // pred_fallthru
        _
      %p215 = scmp.lt.s32.totalorder %s18, 2
      // Predicated region
      $region29: #{tpu_custom_call.1} parent=5 // pred_check
        %p216 = pneg %p215
      $region30: #{tpu_custom_call.1} parent=5 // pred_check_branch
        %218 = sbr.rel (%p216) target = $region32
      $region31: #{tpu_custom_call.1} parent=5 // pred_region
        // Predicated region
        $region33: #{tpu_custom_call.1} parent=31 // pred_check
          %p219 = pneg %p52
        $region34: #{tpu_custom_call.1} parent=31 // pred_check_branch
          %221 = sbr.rel (%p219) target = $region36
        $region35: #{tpu_custom_call.1} parent=31 // pred_region
          %s222 = sand.u32 %s42, 1
          %s223 = scalar_lea.sflag [#allocation4], %s222
          %s224 = sand.u32 %s42, 1
          %s225 = smul.addr %s224, 8
          %s226 = scalar_lea.vmem [#allocation3], %s225
          %s227 = smul.u32 2, %s26
          %s229 = ssub.s32 128, 128
          %230 = vsyncadd %s223, %s229
          %s231 = smul.addr %s25, 2
          %s232 = sadd.s32 %s227, %s231
          %s233 = smul.addr %s232, 64
          %s234 = scalar_lea.hbm %s0, %s233
          %s235 = sshll.u32 %s226, 4
          %s236 = int_to_ptr.vmem [resolvable:$true] %s235
          %241 = dma.hbm_to_vmem [thread:$0]  %s234, 128, %s236, %s223, 64, 64, 4
        $region36: #{tpu_custom_call.1} parent=31 // pred_fallthru
          _
      $region32: #{tpu_custom_call.1} parent=5 // pred_fallthru
        _
      %p242 = scmp.le.s32.totalorder 1, %s18
      %p243 = scmp.lt.s32.totalorder %s18, 3
      %p244 = pnand %p242, %p243
      %p245 = pneg %p244
      // Predicated region
      $region37: #{tpu_custom_call.1} parent=5 // pred_check
        _
      $region38: #{tpu_custom_call.1} parent=5 // pred_check_branch
        %247 = sbr.rel (%p244) target = $region40
      $region39: #{tpu_custom_call.1} parent=5 // pred_region
        %s248 = ssub.s32 %s18, 1
        %s249 = sand.u32 %s45, 1
        %s250 = scalar_lea.sflag [#allocation4], %s249
        %s251 = sand.u32 %s45, 1
        %s252 = smul.addr %s251, 8
        %s253 = scalar_lea.vmem [#allocation3], %s252
        // Predicated region
        $region41: #{tpu_custom_call.1} parent=39 // pred_check
          %p254 = pneg %p58
        $region42: #{tpu_custom_call.1} parent=39 // pred_check_branch
          %256 = sbr.rel (%p254) target = $region44
        $region43: #{tpu_custom_call.1} parent=39 // pred_region
          %257 = dma.done %s250, 128
        $region44: #{tpu_custom_call.1} parent=39 // pred_fallthru
          _
        // Predicated region
        $region45: #{tpu_custom_call.1} parent=39 // pred_check
          %p258 = pneg %p79
        $region46: #{tpu_custom_call.1} parent=39 // pred_check_branch
          %260 = sbr.rel (%p258) target = $region48
        $region47: #{tpu_custom_call.1} parent=39 // pred_region
          %261 = dma.done [#allocation7], 1024
        $region48: #{tpu_custom_call.1} parent=39 // pred_fallthru
          _
        // Predicated region
        $region49: #{tpu_custom_call.1} parent=39 // pred_check
          %p262 = pneg %p121
        $region50: #{tpu_custom_call.1} parent=39 // pred_check_branch
          %264 = sbr.rel (%p262) target = $region52
        $region51: #{tpu_custom_call.1} parent=39 // pred_region
          %265 = dma.done [#allocation7], 1024
        $region52: #{tpu_custom_call.1} parent=39 // pred_fallthru
          _
        %s266 = sand.u32 %s45, 1
        %s267 = scalar_lea.sflag [#allocation4], %s266
        %s268 = sand.u32 %s45, 1
        %s269 = smul.addr %s268, 8
        %s270 = scalar_lea.vmem [#allocation3], %s269
        %p271 = pneg %p58
        %p272 = pneg %p55
        %p273 = pneg %p79
        %p274 = pneg %p76
        %p275 = pneg %p100
        %p276 = pneg %p97
        %p277 = pneg %p121
        %p278 = pneg %p118
        %p279 = pneg %p142
        %p280 = pneg %p139
        %p281 = pneg %p168
        %p282 = pneg %p165
        %s283 = sand.u32 %s155, 1
        %s284 = scalar_lea.sflag [#allocation5], %s283
        %s285 = sand.u32 %s155, 1
        %s286 = smul.addr %s285, 8
        %s287 = scalar_lea.vmem [#allocation9], %s286
        %s288 = smul.u32 2, %s28
        %p290 = scmp.eq.s32.totalorder %s28, 0
        // Predicated region
        $region53: #{tpu_custom_call.1} parent=39 // pred_check
          %p291 = pneg %p290
        $region54: #{tpu_custom_call.1} parent=39 // pred_check_branch
          %293 = sbr.rel (%p291) target = $region56
        $region55: #{tpu_custom_call.1} parent=39 // pred_region
          %294 = vst [vmem:[#allocation2] sm:$0xff] 0.0
        $region56: #{tpu_custom_call.1} parent=39 // pred_fallthru
          _
        %v295 = vld [vmem:[%s253] sm:$0xf]
        %v296 = vld [vmem:[%s253 + $0x4] sm:$0xf]
        %v297 = vld [vmem:[#allocation6] sm:$0xf]
        %v298 = vld [vmem:[#allocation6 + $0x4] sm:$0xf]
        %v299 = vld [vmem:[#allocation6 + $0x8] sm:$0xf]
        %v300 = vld [vmem:[#allocation6 + $0xc] sm:$0xf]
        %v301 = vld [vmem:[#allocation6 + $0x10] sm:$0xf]
        %v302 = vld [vmem:[#allocation6 + $0x14] sm:$0xf]
        %v303 = vld [vmem:[#allocation6 + $0x18] sm:$0xf]
        %v304 = vld [vmem:[#allocation6 + $0x1c] sm:$0xf]
        %v305 = vld [vmem:[#allocation6 + $0x20] sm:$0xf]
        %v306 = vld [vmem:[#allocation6 + $0x24] sm:$0xf]
        %v307 = vld [vmem:[#allocation6 + $0x28] sm:$0xf]
        %v308 = vld [vmem:[#allocation6 + $0x2c] sm:$0xf]
        %v309 = vld [vmem:[#allocation6 + $0x30] sm:$0xf]
        %v310 = vld [vmem:[#allocation6 + $0x34] sm:$0xf]
        %v311 = vld [vmem:[#allocation6 + $0x38] sm:$0xf]
        %v312 = vld [vmem:[#allocation6 + $0x3c] sm:$0xf]
        %v313 = vld [vmem:[%s2] sm:$0x1]
        %v315 = vlaneseq
        %v316 = vshrl.u32 %v315, 7
        %v317 = vsub.s32 0, %v316
        %v318 = vrot.slane %v313, %v317
        %v322 = vunpack.c.l.b16 %v295
        %v323 = vunpack.c.l.b16 %v296
        %v324 = vpack.c.b16 %v323, %v322
        %v342 = vunpack.c.l.b16 %v297
        %v343 = vunpack.c.l.b16 %v298
        %v344 = vunpack.c.l.b16 %v299
        %v345 = vunpack.c.l.b16 %v300
        %v346 = vunpack.c.l.b16 %v301
        %v347 = vunpack.c.l.b16 %v302
        %v348 = vunpack.c.l.b16 %v303
        %v349 = vunpack.c.l.b16 %v304
        %v350 = vunpack.c.l.b16 %v305
        %v351 = vunpack.c.l.b16 %v306
        %v352 = vunpack.c.l.b16 %v307
        %v353 = vunpack.c.l.b16 %v308
        %v354 = vunpack.c.l.b16 %v309
        %v355 = vunpack.c.l.b16 %v310
        %v356 = vunpack.c.l.b16 %v311
        %v357 = vunpack.c.l.b16 %v312
        %v358 = vpack.c.b16 %v343, %v342
        %v359 = vpack.c.b16 %v345, %v344
        %v360 = vpack.c.b16 %v347, %v346
        %v361 = vpack.c.b16 %v349, %v348
        %v362 = vpack.c.b16 %v351, %v350
        %v363 = vpack.c.b16 %v353, %v352
        %v364 = vpack.c.b16 %v355, %v354
        %v365 = vpack.c.b16 %v357, %v356
        %374 = vmatprep.subr.bf16.mxu0 0
        %375 = vmatpush1.bf16.msra.mxu0 %v358
        %376 = vmatprep.subr.bf16.mxu0 0
        %377 = vmatpush1.bf16.msra.mxu0 %v359
        %378 = vmatprep.subr.bf16.mxu0 0
        %379 = vmatpush1.bf16.msra.mxu0 %v360
        %380 = vmatprep.subr.bf16.mxu0 0
        %381 = vmatpush1.bf16.msra.mxu0 %v361
        %382 = vmatprep.subr.bf16.mxu0 0
        %383 = vmatpush1.bf16.msra.mxu0 %v362
        %384 = vmatprep.subr.bf16.mxu0 0
        %385 = vmatpush1.bf16.msra.mxu0 %v363
        %386 = vmatprep.subr.bf16.mxu0 0
        %387 = vmatpush1.bf16.msra.mxu0 %v364
        %388 = vmatprep.subr.bf16.mxu0 0
        %389 = vmatpush1.bf16.msra.mxu0 %v365
        %390 = vmatprep.subr.bf16.mxu0 0
        %391 = vmatpush1.bf16.msra.mxu0 0
        %392 = vmatprep.subr.bf16.mxu0 0
        %393 = vmatpush1.bf16.msra.mxu0 0
        %394 = vmatprep.subr.bf16.mxu0 0
        %395 = vmatpush1.bf16.msra.mxu0 0
        %396 = vmatprep.subr.bf16.mxu0 0
        %397 = vmatpush1.bf16.msra.mxu0 0
        %398 = vmatprep.subr.bf16.mxu0 0
        %399 = vmatpush1.bf16.msra.mxu0 0
        %400 = vmatprep.subr.bf16.mxu0 0
        %401 = vmatpush1.bf16.msra.mxu0 0
        %402 = vmatprep.subr.bf16.mxu0 0
        %403 = vmatpush1.bf16.msra.mxu0 0
        %404 = vmatprep.subr.bf16.mxu0 0
        %405 = vmatpush1.bf16.msra.mxu0 0
        %406 = vmatprep.mubr.bf16.mxu0 0
        %407 = vmatmul.mubr.bf16.gmra.mrb[0].mxu0 %v324
        %v408 = vpop.f32.mrb[0].mxu0
        %v409 = vadd.f32 %v318, %v408
        %v410 = vpop.f32.mrb[0].mxu0
        %v411 = vpop.f32.mrb[0].mxu0
        %v412 = vadd.f32 %v318, %v411
        %v413 = vpop.f32.mrb[0].mxu0
        %414 = vdwg.mxu0
        %v415 = vmul.f32 %v409, %v409
        %v416 = vmul.f32 %v412, %v412
        %v417 = vmul.f32 %v409, %v415
        %v418 = vmul.f32 %v412, %v416
        %v419 = vmul.f32 %v417, 0.044715
        %v420 = vmul.f32 %v418, 0.044715
        %v421 = vadd.f32 %v409, %v419
        %v422 = vadd.f32 %v412, %v420
        %v423 = vmul.f32 %v421, 0.7978846
        %v424 = vmul.f32 %v422, 0.7978846
        %v425 = vtanh.pop %v423
        %v426 = vtanh.pop %v424
        %v427 = vadd.f32 %v425, 1.0
        %v428 = vadd.f32 %v426, 1.0
        %v429 = vmul.f32 %v427, 0.5
        %v430 = vmul.f32 %v428, 0.5
        %v431 = vmul.f32 %v409, %v429
        %v432 = vmul.f32 %v412, %v430
        %v433 = vld [vmem:[#allocation2] sm:$0xff]
        %v434 = vadd.f32 %v431, %v432
        %v435 = vadd.f32 %v433, %v434
        %436 = vst [vmem:[#allocation2] sm:$0xff] %v435
        // Predicated region
        $region57: #{tpu_custom_call.1} parent=39 // pred_check
          %p437 = pneg %p290
        $region58: #{tpu_custom_call.1} parent=39 // pred_check_branch
          %439 = sbr.rel (%p437) target = $region60
        $region59: #{tpu_custom_call.1} parent=39 // pred_region
          %v440 = vld [vmem:[#allocation2] sm:$0xff]
          %v441 = vrot.slane %v440, 4
          %v442 = vadd.f32 %v440, %v441
          %v443 = vrot.slane %v442, 2
          %v444 = vadd.f32 %v442, %v443
          %v445 = vrot.slane %v444, 1
          %v446 = vadd.f32 %v444, %v445
          %v447 = vmul.f32 %v446, 0.0625
          %v448 = vpack.c.bf16 %v447, %v447
          %v449 = vld [vmem:[#allocation8] sm:$0xf]
          %v450 = vld [vmem:[#allocation8 + $0x4] sm:$0xf]
          %v451 = vld [vmem:[#allocation8 + $0x8] sm:$0xf]
          %v452 = vld [vmem:[#allocation8 + $0xc] sm:$0xf]
          %v453 = vld [vmem:[#allocation8 + $0x10] sm:$0xf]
          %v454 = vld [vmem:[#allocation8 + $0x14] sm:$0xf]
          %v455 = vld [vmem:[#allocation8 + $0x18] sm:$0xf]
          %v456 = vld [vmem:[#allocation8 + $0x1c] sm:$0xf]
          %v457 = vld [vmem:[#allocation8 + $0x20] sm:$0xf]
          %v458 = vld [vmem:[#allocation8 + $0x24] sm:$0xf]
          %v459 = vld [vmem:[#allocation8 + $0x28] sm:$0xf]
          %v460 = vld [vmem:[#allocation8 + $0x2c] sm:$0xf]
          %v461 = vld [vmem:[#allocation8 + $0x30] sm:$0xf]
          %v462 = vld [vmem:[#allocation8 + $0x34] sm:$0xf]
          %v463 = vld [vmem:[#allocation8 + $0x38] sm:$0xf]
          %v464 = vld [vmem:[#allocation8 + $0x3c] sm:$0xf]
          %v465 = vld [vmem:[%s4] sm:$0x1]
          %v482 = vunpack.c.l.b16 %v449
          %v483 = vunpack.c.l.b16 %v450
          %v484 = vunpack.c.l.b16 %v451
          %v485 = vunpack.c.l.b16 %v452
          %v486 = vunpack.c.l.b16 %v453
          %v487 = vunpack.c.l.b16 %v454
          %v488 = vunpack.c.l.b16 %v455
          %v489 = vunpack.c.l.b16 %v456
          %v490 = vunpack.c.l.b16 %v457
          %v491 = vunpack.c.l.b16 %v458
          %v492 = vunpack.c.l.b16 %v459
          %v493 = vunpack.c.l.b16 %v460
          %v494 = vunpack.c.l.b16 %v461
          %v495 = vunpack.c.l.b16 %v462
          %v496 = vunpack.c.l.b16 %v463
          %v497 = vunpack.c.l.b16 %v464
          %v498 = vpack.c.b16 %v483, %v482
          %v499 = vpack.c.b16 %v485, %v484
          %v500 = vpack.c.b16 %v487, %v486
          %v501 = vpack.c.b16 %v489, %v488
          %v502 = vpack.c.b16 %v491, %v490
          %v503 = vpack.c.b16 %v493, %v492
          %v504 = vpack.c.b16 %v495, %v494
          %v505 = vpack.c.b16 %v497, %v496
          %514 = vmatprep.subr.bf16.mxu0 0
          %515 = vmatpush1.bf16.msra.mxu0 %v498
          %516 = vmatprep.subr.bf16.mxu0 0
          %517 = vmatpush1.bf16.msra.mxu0 %v499
          %518 = vmatprep.subr.bf16.mxu0 0
          %519 = vmatpush1.bf16.msra.mxu0 %v500
          %520 = vmatprep.subr.bf16.mxu0 0
          %521 = vmatpush1.bf16.msra.mxu0 %v501
          %522 = vmatprep.subr.bf16.mxu0 0
          %523 = vmatpush1.bf16.msra.mxu0 %v502
          %524 = vmatprep.subr.bf16.mxu0 0
          %525 = vmatpush1.bf16.msra.mxu0 %v503
          %526 = vmatprep.subr.bf16.mxu0 0
          %527 = vmatpush1.bf16.msra.mxu0 %v504
          %528 = vmatprep.subr.bf16.mxu0 0
          %529 = vmatpush1.bf16.msra.mxu0 %v505
          %530 = vmatprep.subr.bf16.mxu0 0
          %531 = vmatpush1.bf16.msra.mxu0 0
          %532 = vmatprep.subr.bf16.mxu0 0
          %533 = vmatpush1.bf16.msra.mxu0 0
          %534 = vmatprep.subr.bf16.mxu0 0
          %535 = vmatpush1.bf16.msra.mxu0 0
          %536 = vmatprep.subr.bf16.mxu0 0
          %537 = vmatpush1.bf16.msra.mxu0 0
          %538 = vmatprep.subr.bf16.mxu0 0
          %539 = vmatpush1.bf16.msra.mxu0 0
          %540 = vmatprep.subr.bf16.mxu0 0
          %541 = vmatpush1.bf16.msra.mxu0 0
          %542 = vmatprep.subr.bf16.mxu0 0
          %543 = vmatpush1.bf16.msra.mxu0 0
          %544 = vmatprep.subr.bf16.mxu0 0
          %545 = vmatpush1.bf16.msra.mxu0 0
          %546 = vmatprep.mubr.bf16.mxu0 0
          %547 = vmatmul.mubr.bf16.gmra.mrb[0].mxu0 %v448
          %v548 = vpop.f32.mrb[0].mxu0
          %v549 = vadd.f32 %v465, %v548
          %v550 = vpop.f32.mrb[0].mxu0
          %v551 = vpop.f32.mrb[0].mxu0
          %v552 = vpop.f32.mrb[0].mxu0
          %553 = vdwg.mxu0
          %v554 = vlaneseq
          %v555 = vshrl.u32 %v554, 7
          %v556 = vsub.s32 0, %v555
          %v557 = vrot.slane %v549, %v556
          %558 = vst [vmem:[%s287] sm:$0xff] %v557
        $region60: #{tpu_custom_call.1} parent=39 // pred_fallthru
          _
        %s559 = sand.u32 %s155, 1
        %s560 = scalar_lea.sflag [#allocation5], %s559
        %s561 = sand.u32 %s155, 1
        %s562 = smul.addr %s561, 8
        %s563 = scalar_lea.vmem [#allocation9], %s562
        // Predicated region
        $region61: #{tpu_custom_call.1} parent=39 // pred_check
          %p564 = pneg %p165
        $region62: #{tpu_custom_call.1} parent=39 // pred_check_branch
          %566 = sbr.rel (%p564) target = $region64
        $region63: #{tpu_custom_call.1} parent=39 // pred_region
          %s568 = ssub.s32 128, 128
          %569 = vsyncadd %s560, %s568
          %s570 = smul.addr %s27, 128
          %s571 = scalar_lea.hbm %s5, %s570
          %s573 = sshll.u32 %s563, 4
          %s574 = int_to_ptr.vmem [resolvable:$true] %s573
          %576 = dma.vmem_to_hbm [thread:$0]  %s574, 128, %s571, %s560
        $region64: #{tpu_custom_call.1} parent=39 // pred_fallthru
          _
      $region40: #{tpu_custom_call.1} parent=5 // pred_fallthru
        _
      %p577 = scmp.le.s32.totalorder 2, %s18
      // Predicated region
      $region65: #{tpu_custom_call.1} parent=5 // pred_check
        %p578 = pneg %p577
      $region66: #{tpu_custom_call.1} parent=5 // pred_check_branch
        %580 = sbr.rel (%p578) target = $region68
      $region67: #{tpu_custom_call.1} parent=5 // pred_region
        %s581 = ssub.s32 %s18, 2
        // Predicated region
        $region69: #{tpu_custom_call.1} parent=67 // pred_check
          %p582 = pneg %p171
        $region70: #{tpu_custom_call.1} parent=67 // pred_check_branch
          %584 = sbr.rel (%p582) target = $region72
        $region71: #{tpu_custom_call.1} parent=67 // pred_region
          %s585 = sand.u32 %s156, 1
          %s586 = scalar_lea.sflag [#allocation5], %s585
          %s587 = sand.u32 %s156, 1
          %s588 = smul.addr %s587, 8
          %s589 = scalar_lea.vmem [#allocation9], %s588
          %590 = dma.done %s586, 128
        $region72: #{tpu_custom_call.1} parent=67 // pred_fallthru
          _
      $region68: #{tpu_custom_call.1} parent=5 // pred_fallthru
        _
    $region6: #{tpu_custom_call.1} parent=1 // loop_footer
      %s22 = sadd.s32 1, %s18
    $region7: #{tpu_custom_call.1} parent=1 // loop_footer_branch
      %17 = sbr.rel target = $region3
    $region8: #{tpu_custom_call.1} parent=1 // loop_exit
      _
    %591 = vsyncpa [#allocation4], 1
    %s592 = scalar_lea.sflag [#allocation4], 1
    %593 = vsyncpa %s592, 1
    %594 = vsyncpa [#allocation7], 1
    %595 = vsyncpa [#allocation5], 1
    %s596 = scalar_lea.sflag [#allocation5], 1
    %597 = vsyncpa %s596, 1

</llo_original>
